<compile_context>
chip_gen: v7x
topology: tpu7x:2x2x1
jax: 0.10.0
libtpu: 0.0.40
codegen_flags: <defaults>
</compile_context>

<pallas_src>
import functools
import math

import jax
import jax.numpy as jnp
from jax.experimental import pallas as pl
from jax.experimental.pallas import tpu as pltpu

_INV_SQRT2 = 1.0 / math.sqrt(2.0)


def _ffn_kernel(x_ref, w1v_ref, w1g_ref, b1v_ref, b1g_ref, w2_ref, b2_ref,
                o_ref, acc_ref, *, approximate_gelu):
    """One (row-tile, hidden-slab) step: proj1 halves + GEGLU + accumulate proj2."""
    j = pl.program_id(1)

    @pl.when(j == 0)
    def _():
        acc_ref[...] = jnp.zeros_like(acc_ref)

    x = x_ref[...]  # native dtype -> MXU directly (f32 accumulation below)

    # First projection, value / gate halves computed as two separate dots
    # (avoids materializing + slicing a [tm, 2H] intermediate on the lane dim).
    val = jnp.dot(x, w1v_ref[...], preferred_element_type=jnp.float32)
    val = val + b1v_ref[...].astype(jnp.float32)
    gates = jnp.dot(x, w1g_ref[...], preferred_element_type=jnp.float32)
    gates = gates + b1g_ref[...].astype(jnp.float32)

    # GEGLU: elementwise math in f32 (v5e VPU/EUP have no bf16 path).
    if approximate_gelu:
        # tanh-approx GELU routes through the otherwise-idle EUP slot.
        c = math.sqrt(2.0 / math.pi)
        gelu_g = 0.5 * gates * (
            1.0 + jnp.tanh(c * (gates + 0.044715 * gates * gates * gates)))
    else:
        # Exact erf GELU -> matches torch.nn.functional.gelu default.
        gelu_g = 0.5 * gates * (1.0 + jax.lax.erf(gates * _INV_SQRT2))
    g = val * gelu_g

    # Dropout(p=0.0) is the identity -> skipped.
    # TODO(synk): for dropout p > 0, draw a mask via pltpu.prng_seed/prng_random_bits.

    # Second projection on this hidden slab, accumulated into the resident
    # f32 scratch (output BlockSpec is constant along the hidden grid axis).
    acc_ref[...] += jnp.dot(g.astype(w2_ref.dtype), w2_ref[...],
                            preferred_element_type=jnp.float32)

    @pl.when(j == pl.num_programs(1) - 1)
    def _():
        o_ref[...] = (acc_ref[...] + b2_ref[...].astype(jnp.float32)
                      ).astype(o_ref.dtype)


def feedforward_pallas(x, w1, b1, w2, b2, *, tm=256, th=None,
                       approximate_gelu=False):
    """x: [B, S, D]; w1: [D, 2H]; b1: [2H]; w2: [H, D]; b2: [D]."""
    B, S, D = x.shape
    M = B * S
    H2 = w1.shape[1]
    H = H2 // 2
    assert w2.shape == (H, D)

    # Split W1 / b1 into value and gate halves outside the kernel.
    w1v, w1g = w1[:, :H], w1[:, H:]
    b1v = b1[:H].reshape(1, H)
    b1g = b1[H:].reshape(1, H)
    b2_2d = b2.reshape(1, D)

    # Row tiling: large tiles amortize the ~0.35us/step pipeline overhead and
    # fill the MXU; clamp for tiny inputs and pad ragged token counts.
    row_align = 8 if x.dtype == jnp.float32 else 16  # bf16 min sublane tile = 16
    tm = max(row_align, min(tm, pl.cdiv(M, row_align) * row_align))
    Mp = pl.cdiv(M, tm) * tm

    x2 = x.reshape(M, D)
    if Mp != M:
        x2 = jnp.pad(x2, ((0, Mp - M), (0, 0)))

    # Hidden tiling: weights stay resident when H is small; at large H stream
    # 512-wide slabs so per-step weight VMEM stays bounded (v7x: 64 MiB VMEM).
    if th is None:
        th = H if (H <= 1024 or H % 512 != 0) else 512
    assert H % th == 0, "hidden tile must divide the hidden dim"

    # NOTE: for best store throughput D should be a multiple of 128 in real
    # use (lane-dense output); small D here is just the toy test shape.
    grid = (Mp // tm, H // th)

    out2 = pl.pallas_call(
        functools.partial(_ffn_kernel, approximate_gelu=approximate_gelu),
        out_shape=jax.ShapeDtypeStruct((Mp, D), x.dtype),
        grid_spec=pltpu.PrefetchScalarGridSpec(
            num_scalar_prefetch=0,
            grid=grid,
            in_specs=[
                pl.BlockSpec((tm, D), lambda i, j: (i, 0)),   # x rows
                pl.BlockSpec((D, th), lambda i, j: (0, j)),   # W1 value half
                pl.BlockSpec((D, th), lambda i, j: (0, j)),   # W1 gate half
                pl.BlockSpec((1, th), lambda i, j: (0, j)),   # b1 value half
                pl.BlockSpec((1, th), lambda i, j: (0, j)),   # b1 gate half
                pl.BlockSpec((th, D), lambda i, j: (j, 0)),   # W2 hidden slab
                pl.BlockSpec((1, D), lambda i, j: (0, 0)),    # b2
            ],
            out_specs=pl.BlockSpec((tm, D), lambda i, j: (i, 0)),
            scratch_shapes=[pltpu.VMEM((tm, D), jnp.float32)],
        ),
        compiler_params=pltpu.CompilerParams(
            dimension_semantics=("parallel", "arbitrary"),
            vmem_limit_bytes=64 * 1024 * 1024,
        ),
    )(x2, w1v, w1g, b1v, b1g, w2, b2_2d)

    if Mp != M:
        out2 = out2[:M]
    return out2.reshape(B, S, D)


def feedforward_ref(x, w1, b1, w2, b2):
    """Pure-JAX reference mirroring the PyTorch module."""
    h = jnp.dot(x, w1, precision=jax.lax.Precision.HIGHEST) + b1
    H = w2.shape[0]
    val, gates = h[..., :H], h[..., H:]
    g = val * jax.nn.gelu(gates, approximate=False)
    return jnp.dot(g, w2, precision=jax.lax.Precision.HIGHEST) + b2


def init_params(key, dim, mult=4, dtype=jnp.float32):
    """nn.Linear-style init (uniform +/- 1/sqrt(fan_in)); weights stored as
    (in_features, out_features), i.e. transposed vs torch, so kernel does x @ W."""
    hidden = dim * mult
    k1, k2, k3, k4 = jax.random.split(key, 4)
    lim1 = 1.0 / math.sqrt(dim)
    lim2 = 1.0 / math.sqrt(hidden)
    w1 = jax.random.uniform(k1, (dim, 2 * hidden), dtype, -lim1, lim1)
    b1 = jax.random.uniform(k2, (2 * hidden,), dtype, -lim1, lim1)
    w2 = jax.random.uniform(k3, (hidden, dim), dtype, -lim2, lim2)
    b2 = jax.random.uniform(k4, (dim,), dtype, -lim2, lim2)
    return w1, b1, w2, b2


if __name__ == "__main__":
    key = jax.random.PRNGKey(0)
    kx, kp = jax.random.split(key)

    batch, seq, dim, mult = 2, 8, 32, 4
    x = jax.random.normal(kx, (batch, seq, dim), dtype=jnp.float32)
    w1, b1, w2, b2 = init_params(kp, dim, mult)

    out = feedforward_pallas(x, w1, b1, w2, b2)
    out = jax.block_until_ready(out)

    ref = feedforward_ref(x, w1, b1, w2, b2)
    assert out.shape == (batch, seq, dim)
    assert jnp.allclose(out, ref, rtol=1e-3, atol=1e-3), "mismatch vs JAX reference"

    print("KERNEL_OK")
</pallas_src>

<mosaic_0001>
module attributes {stable_mosaic.version = 11 : i64} {
  func.func @_ffn_kernel(%arg0: i32, %arg1: i32, %arg2: memref<16x32xf32, #tpu.memory_space<vmem>>, %arg3: memref<32x128xf32, #tpu.memory_space<vmem>>, %arg4: memref<32x128xf32, #tpu.memory_space<vmem>>, %arg5: memref<1x128xf32, #tpu.memory_space<vmem>>, %arg6: memref<1x128xf32, #tpu.memory_space<vmem>>, %arg7: memref<128x32xf32, #tpu.memory_space<vmem>>, %arg8: memref<1x32xf32, #tpu.memory_space<vmem>>, %arg9: memref<16x32xf32, #tpu.memory_space<vmem>>, %arg10: memref<16x32xf32, #tpu.memory_space<vmem>>) attributes {dimension_semantics = [#tpu.dimension_semantics<parallel>, #tpu.dimension_semantics<arbitrary>], iteration_bounds = array<i64: 1, 1>, scalar_prefetch = 0 : i64, scratch_operands = 1 : i64, tpu.core_type = #tpu.core_type<tc>, window_params = [{transform_indices = @transform_0, window_bounds = array<i64: 16, 32>}, {transform_indices = @transform_1, window_bounds = array<i64: 32, 128>}, {transform_indices = @transform_2, window_bounds = array<i64: 32, 128>}, {transform_indices = @transform_3, window_bounds = array<i64: 1, 128>}, {transform_indices = @transform_4, window_bounds = array<i64: 1, 128>}, {transform_indices = @transform_5, window_bounds = array<i64: 128, 32>}, {pipeline_mode = #tpu.pipeline_mode<synchronous>, transform_indices = @transform_6, window_bounds = array<i64: 1, 32>}, {transform_indices = @transform_7, window_bounds = array<i64: 16, 32>}]} {
    %c0_i32 = arith.constant 0 : i32
    %0 = arith.cmpi eq, %arg1, %c0_i32 : i32
    %1 = arith.extui %0 : i1 to i32
    %c0_i32_0 = arith.constant 0 : i32
    %2 = arith.cmpi ne, %1, %c0_i32_0 : i32
    scf.if %2 {
      %cst_23 = arith.constant 0.000000e+00 : f32
      %31 = vector.broadcast %cst_23 : f32 to vector<16x32xf32>
      %c0_24 = arith.constant 0 : index
      %c0_25 = arith.constant 0 : index
      %32 = vector.load %arg10[%c0_24, %c0_25] : memref<16x32xf32, #tpu.memory_space<vmem>>, vector<16x32xf32>
      tpu.vector_store %arg10[%c0_24, %c0_25], %31 {strides = array<i32>} : memref<16x32xf32, #tpu.memory_space<vmem>>, vector<16x32xf32>,
    } else {
    }
    %c0 = arith.constant 0 : index
    %c0_1 = arith.constant 0 : index
    %3 = vector.load %arg2[%c0, %c0_1] : memref<16x32xf32, #tpu.memory_space<vmem>>, vector<16x32xf32>
    %c0_2 = arith.constant 0 : index
    %c0_3 = arith.constant 0 : index
    %4 = vector.load %arg3[%c0_2, %c0_3] : memref<32x128xf32, #tpu.memory_space<vmem>>, vector<32x128xf32>
    %cst = arith.constant dense<0.000000e+00> : vector<16x128xf32>
    %5 = tpu.matmul %3, %4, %cst {dimension_numbers = #tpu.dot_dimension_numbers<[1], [0], [0], [1], [0, 0, 1, 1], [], []>} : vector<16x32xf32>, vector<32x128xf32>, vector<16x128xf32> -> vector<16x128xf32>
    %c0_4 = arith.constant 0 : index
    %c0_5 = arith.constant 0 : index
    %6 = vector.load %arg5[%c0_4, %c0_5] : memref<1x128xf32, #tpu.memory_space<vmem>>, vector<1x128xf32>
    %7 = vector.broadcast %6 : vector<1x128xf32> to vector<16x128xf32>
    %8 = arith.addf %5, %7 : vector<16x128xf32>
    %c0_6 = arith.constant 0 : index
    %c0_7 = arith.constant 0 : index
    %9 = vector.load %arg4[%c0_6, %c0_7] : memref<32x128xf32, #tpu.memory_space<vmem>>, vector<32x128xf32>
    %cst_8 = arith.constant dense<0.000000e+00> : vector<16x128xf32>
    %10 = tpu.matmul %3, %9, %cst_8 {dimension_numbers = #tpu.dot_dimension_numbers<[1], [0], [0], [1], [0, 0, 1, 1], [], []>} : vector<16x32xf32>, vector<32x128xf32>, vector<16x128xf32> -> vector<16x128xf32>
    %c0_9 = arith.constant 0 : index
    %c0_10 = arith.constant 0 : index
    %11 = vector.load %arg6[%c0_9, %c0_10] : memref<1x128xf32, #tpu.memory_space<vmem>>, vector<1x128xf32>
    %12 = vector.broadcast %11 : vector<1x128xf32> to vector<16x128xf32>
    %13 = arith.addf %10, %12 : vector<16x128xf32>
    %cst_11 = arith.constant 5.000000e-01 : f32
    %14 = vector.broadcast %cst_11 : f32 to vector<16x128xf32>
    %15 = arith.mulf %14, %13 : vector<16x128xf32>
    %cst_12 = arith.constant 0.707106769 : f32
    %16 = vector.broadcast %cst_12 : f32 to vector<16x128xf32>
    %17 = arith.mulf %13, %16 : vector<16x128xf32>
    %18 = math.erf %17 : vector<16x128xf32>
    %cst_13 = arith.constant 1.000000e+00 : f32
    %19 = vector.broadcast %cst_13 : f32 to vector<16x128xf32>
    %20 = arith.addf %19, %18 : vector<16x128xf32>
    %21 = arith.mulf %15, %20 : vector<16x128xf32>
    %22 = arith.mulf %8, %21 : vector<16x128xf32>
    %c0_14 = arith.constant 0 : index
    %c0_15 = arith.constant 0 : index
    %23 = vector.load %arg10[%c0_14, %c0_15] : memref<16x32xf32, #tpu.memory_space<vmem>>, vector<16x32xf32>
    %c0_16 = arith.constant 0 : index
    %c0_17 = arith.constant 0 : index
    %24 = vector.load %arg7[%c0_16, %c0_17] : memref<128x32xf32, #tpu.memory_space<vmem>>, vector<128x32xf32>
    %cst_18 = arith.constant dense<0.000000e+00> : vector<16x32xf32>
    %25 = tpu.matmul %22, %24, %cst_18 {dimension_numbers = #tpu.dot_dimension_numbers<[1], [0], [0], [1], [0, 0, 1, 1], [], []>} : vector<16x128xf32>, vector<128x32xf32>, vector<16x32xf32> -> vector<16x32xf32>
    %26 = arith.addf %23, %25 : vector<16x32xf32>
    %c0_19 = arith.constant 0 : index
    %c0_20 = arith.constant 0 : index
    %27 = vector.load %arg10[%c0_19, %c0_20] : memref<16x32xf32, #tpu.memory_space<vmem>>, vector<16x32xf32>
    tpu.vector_store %arg10[%c0_19, %c0_20], %26 {strides = array<i32>} : memref<16x32xf32, #tpu.memory_space<vmem>>, vector<16x32xf32>,
    %c0_i32_21 = arith.constant 0 : i32
    %28 = arith.cmpi eq, %arg1, %c0_i32_21 : i32
    %29 = arith.extui %28 : i1 to i32
    %c0_i32_22 = arith.constant 0 : i32
    %30 = arith.cmpi ne, %29, %c0_i32_22 : i32
    scf.if %30 {
      %c0_23 = arith.constant 0 : index
      %c0_24 = arith.constant 0 : index
      %31 = vector.load %arg10[%c0_23, %c0_24] : memref<16x32xf32, #tpu.memory_space<vmem>>, vector<16x32xf32>
      %c0_25 = arith.constant 0 : index
      %c0_26 = arith.constant 0 : index
      %32 = vector.load %arg8[%c0_25, %c0_26] : memref<1x32xf32, #tpu.memory_space<vmem>>, vector<1x32xf32>
      %33 = vector.broadcast %32 : vector<1x32xf32> to vector<16x32xf32>
      %34 = arith.addf %31, %33 : vector<16x32xf32>
      %c0_27 = arith.constant 0 : index
      %c0_28 = arith.constant 0 : index
      %35 = vector.load %arg9[%c0_27, %c0_28] : memref<16x32xf32, #tpu.memory_space<vmem>>, vector<16x32xf32>
      tpu.vector_store %arg9[%c0_27, %c0_28], %34 {strides = array<i32>} : memref<16x32xf32, #tpu.memory_space<vmem>>, vector<16x32xf32>,
    } else {
    }
    return
  }
  func.func @transform_0(%arg0: i32, %arg1: i32) -> (i32, i32) {
    %c0_i32 = arith.constant 0 : i32
    %c0_i32_0 = arith.constant 0 : i32
    return %arg0, %c0_i32 : i32, i32
  }
  func.func @transform_1(%arg0: i32, %arg1: i32) -> (i32, i32) {
    %c0_i32 = arith.constant 0 : i32
    %c0_i32_0 = arith.constant 0 : i32
    return %c0_i32, %arg1 : i32, i32
  }
  func.func @transform_2(%arg0: i32, %arg1: i32) -> (i32, i32) {
    %c0_i32 = arith.constant 0 : i32
    %c0_i32_0 = arith.constant 0 : i32
    return %c0_i32, %arg1 : i32, i32
  }
  func.func @transform_3(%arg0: i32, %arg1: i32) -> (i32, i32) {
    %c0_i32 = arith.constant 0 : i32
    %c0_i32_0 = arith.constant 0 : i32
    return %c0_i32, %arg1 : i32, i32
  }
  func.func @transform_4(%arg0: i32, %arg1: i32) -> (i32, i32) {
    %c0_i32 = arith.constant 0 : i32
    %c0_i32_0 = arith.constant 0 : i32
    return %c0_i32, %arg1 : i32, i32
  }
  func.func @transform_5(%arg0: i32, %arg1: i32) -> (i32, i32) {
    %c0_i32 = arith.constant 0 : i32
    %c0_i32_0 = arith.constant 0 : i32
    return %arg1, %c0_i32 : i32, i32
  }
  func.func @transform_6(%arg0: i32, %arg1: i32) -> (i32, i32) {
    %c0_i32 = arith.constant 0 : i32
    %c0_i32_0 = arith.constant 0 : i32
    %c0_i32_1 = arith.constant 0 : i32
    return %c0_i32, %c0_i32_0 : i32, i32
  }
  func.func @transform_7(%arg0: i32, %arg1: i32) -> (i32, i32) {
    %c0_i32 = arith.constant 0 : i32
    %c0_i32_0 = arith.constant 0 : i32
    return %arg0, %c0_i32 : i32, i32
  }
}

</mosaic_0001>

<llo_original>
// kernel: tpu_custom_call.1
$region0: #{tpu_custom_call.1}
  #allocation0 [shape = 'u32[]', space=smem, size = 0x4, offset = 0x4, fixed_abs, tag = 'smem constant byte address 0x4 - core index']
  #allocation1 [shape = 'u32[144,128]{1,0:T(1,128)}', space=vmem, size = 0x12000, scoped, tag = 'internal scratch']
  #allocation2 [shape = 'f32[16,32]{1,0:T(8,128)}', space=vmem, size = 0x2000, scoped, tag = 'scratch operand']
  %s0 = inlined_call_operand.hbm [shape: f32[16,32], index: 0, kind: input, shape index: {}]
  %s1 = inlined_call_operand.hbm [shape: f32[32,128], index: 1, kind: input, shape index: {}]
  %s2 = inlined_call_operand.hbm [shape: f32[32,128], index: 2, kind: input, shape index: {}]
  %s3 = inlined_call_operand.hbm [shape: f32[1,128], index: 3, kind: input, shape index: {}]
  %s4 = inlined_call_operand.hbm [shape: f32[1,128], index: 4, kind: input, shape index: {}]
  %s5 = inlined_call_operand.hbm [shape: f32[128,32], index: 5, kind: input, shape index: {}]
  %s6 = inlined_call_operand.hbm [shape: f32[1,32], index: 6, kind: input, shape index: {}]
  %s7 = inlined_call_operand.hbm [shape: f32[16,32], index: 7, kind: output, shape index: {}]
  %s8 = sld [smem:[#allocation0]]
  $region74: #{tpu_custom_call.1} parent=0
    _
  %s10 = ssub.s32 1, %s8
  %s11 = scalar_select 0, %s10, %s8
  $region1: #{tpu_custom_call.1} parent=0
    #allocation3 [shape = 'u8[8192]{0}', space=vmem, size = 0x2000, scoped, tag = 'input window, operand 0, single buffered']
    #allocation4 [shape = 's32[1]{0}', space=sflag, size = 0x4, scoped, tag = 'scoped memory for tpu_custom_call.1']
    #allocation5 [shape = 's32[1]{0}', space=sflag, size = 0x4, scoped, tag = 'scoped memory for tpu_custom_call.1']
    #allocation6 [shape = 'u8[16384]{0}', space=vmem, size = 0x4000, scoped, tag = 'input window, operand 1, single buffered']
    #allocation7 [shape = 's32[1]{0}', space=sflag, size = 0x4, scoped, tag = 'scoped memory for tpu_custom_call.1']
    #allocation8 [shape = 'u8[16384]{0}', space=vmem, size = 0x4000, scoped, tag = 'input window, operand 2, single buffered']
    #allocation9 [shape = 'u8[512]{0}', space=vmem, size = 0x400, scoped, tag = 'input window, operand 3, single buffered']
    #allocation10 [shape = 's32[1]{0}', space=sflag, size = 0x4, scoped, tag = 'scoped memory for tpu_custom_call.1']
    #allocation11 [shape = 'u8[512]{0}', space=vmem, size = 0x400, scoped, tag = 'input window, operand 4, single buffered']
    #allocation12 [shape = 'u8[65536]{0}', space=vmem, size = 0x10000, scoped, tag = 'input window, operand 5, single buffered']
    #allocation13 [shape = 's32[1]{0}', space=sflag, size = 0x4, scoped, tag = 'scoped memory for tpu_custom_call.1']
    #allocation14 [shape = 'u8[512]{0}', space=vmem, size = 0x400, scoped, tag = 'input window, operand 6, single buffered']
    #allocation15 [shape = 'u8[8192]{0}', space=vmem, size = 0x2000, scoped, tag = 'output window, operand 0, single buffered']
    %12 = vsyncpa [#allocation4], 0
    %13 = vsyncpa [#allocation7], 0
    %14 = vsyncpa [#allocation10], 0
    %15 = vsyncpa [#allocation13], 0
    %16 = vsyncpa [#allocation5], 0
    // Predicated region
    $region2: #{tpu_custom_call.1} parent=1 // pred_check
      _
    $region3: #{tpu_custom_call.1} parent=1 // pred_check_branch
      %18 = sbr.rel (0) target = $region5
    $region4: #{tpu_custom_call.1} parent=1 // pred_region
      %s20 = ssub.s32 256, 256
      %21 = vsyncadd [#allocation4], %s20
      %s22 = sshll.u32 [#allocation3], 4
      %s23 = int_to_ptr.vmem [resolvable:$true] %s22
      %28 = dma.hbm_to_vmem [thread:$0]  %s0, 256, %s23, [#allocation4], 128, 128, 8
    $region5: #{tpu_custom_call.1} parent=1 // pred_fallthru
      _
    // Predicated region
    $region6: #{tpu_custom_call.1} parent=1 // pred_check
      _
    $region7: #{tpu_custom_call.1} parent=1 // pred_check_branch
      %30 = sbr.rel (0) target = $region9
    $region8: #{tpu_custom_call.1} parent=1 // pred_region
      %s32 = ssub.s32 512, 512
      %33 = vsyncadd [#allocation7], %s32
      %s34 = sshll.u32 [#allocation6], 4
      %s35 = int_to_ptr.vmem [resolvable:$true] %s34
      %40 = dma.hbm_to_vmem [thread:$0]  %s1, 512, %s35, [#allocation7], 128, 128, 8
    $region9: #{tpu_custom_call.1} parent=1 // pred_fallthru
      _
    // Predicated region
    $region10: #{tpu_custom_call.1} parent=1 // pred_check
      _
    $region11: #{tpu_custom_call.1} parent=1 // pred_check_branch
      %42 = sbr.rel (0) target = $region13
    $region12: #{tpu_custom_call.1} parent=1 // pred_region
      %s44 = ssub.s32 512, 512
      %45 = vsyncadd [#allocation7], %s44
      %s46 = sshll.u32 [#allocation8], 4
      %s47 = int_to_ptr.vmem [resolvable:$true] %s46
      %52 = dma.hbm_to_vmem [thread:$0]  %s2, 512, %s47, [#allocation7], 128, 128, 8
    $region13: #{tpu_custom_call.1} parent=1 // pred_fallthru
      _
    // Predicated region
    $region14: #{tpu_custom_call.1} parent=1 // pred_check
      _
    $region15: #{tpu_custom_call.1} parent=1 // pred_check_branch
      %54 = sbr.rel (0) target = $region17
    $region16: #{tpu_custom_call.1} parent=1 // pred_region
      %s56 = ssub.s32 16, 16
      %57 = vsyncadd [#allocation10], %s56
      %s59 = sshll.u32 [#allocation9], 4
      %s60 = int_to_ptr.vmem [resolvable:$true] %s59
      %62 = dma.hbm_to_vmem [thread:$0]  %s3, 16, %s60, [#allocation10]
    $region17: #{tpu_custom_call.1} parent=1 // pred_fallthru
      _
    // Predicated region
    $region18: #{tpu_custom_call.1} parent=1 // pred_check
      _
    $region19: #{tpu_custom_call.1} parent=1 // pred_check_branch
      %64 = sbr.rel (0) target = $region21
    $region20: #{tpu_custom_call.1} parent=1 // pred_region
      %s66 = ssub.s32 16, 16
      %67 = vsyncadd [#allocation10], %s66
      %s69 = sshll.u32 [#allocation11], 4
      %s70 = int_to_ptr.vmem [resolvable:$true] %s69
      %72 = dma.hbm_to_vmem [thread:$0]  %s4, 16, %s70, [#allocation10]
    $region21: #{tpu_custom_call.1} parent=1 // pred_fallthru
      _
    // Predicated region
    $region22: #{tpu_custom_call.1} parent=1 // pred_check
      _
    $region23: #{tpu_custom_call.1} parent=1 // pred_check_branch
      %74 = sbr.rel (0) target = $region25
    $region24: #{tpu_custom_call.1} parent=1 // pred_region
      %s76 = ssub.s32 2048, 2048
      %77 = vsyncadd [#allocation13], %s76
      %s78 = sshll.u32 [#allocation12], 4
      %s79 = int_to_ptr.vmem [resolvable:$true] %s78
      %84 = dma.hbm_to_vmem [thread:$0]  %s5, 2048, %s79, [#allocation13], 128, 128, 8
    $region25: #{tpu_custom_call.1} parent=1 // pred_fallthru
      _
    // Predicated region
    $region26: #{tpu_custom_call.1} parent=1 // pred_check
      _
    $region27: #{tpu_custom_call.1} parent=1 // pred_check_branch
      %86 = sbr.rel (0) target = $region29
    $region28: #{tpu_custom_call.1} parent=1 // pred_region
      %s88 = ssub.s32 16, 16
      %89 = vsyncadd [#allocation13], %s88
      %s91 = sshll.u32 [#allocation14], 4
      %s92 = int_to_ptr.vmem [resolvable:$true] %s91
      %94 = dma.hbm_to_vmem [thread:$0]  %s6, 16, %s92, [#allocation13]
    $region29: #{tpu_custom_call.1} parent=1 // pred_fallthru
      _
    // Predicated region
    $region30: #{tpu_custom_call.1} parent=1 // pred_check
      _
    $region31: #{tpu_custom_call.1} parent=1 // pred_check_branch
      %96 = sbr.rel (0) target = $region33
    $region32: #{tpu_custom_call.1} parent=1 // pred_region
      %97 = dma.done [#allocation4], 256
    $region33: #{tpu_custom_call.1} parent=1 // pred_fallthru
      _
    // Predicated region
    $region34: #{tpu_custom_call.1} parent=1 // pred_check
      _
    $region35: #{tpu_custom_call.1} parent=1 // pred_check_branch
      %99 = sbr.rel (0) target = $region37
    $region36: #{tpu_custom_call.1} parent=1 // pred_region
      %100 = dma.done [#allocation7], 512
    $region37: #{tpu_custom_call.1} parent=1 // pred_fallthru
      _
    // Predicated region
    $region38: #{tpu_custom_call.1} parent=1 // pred_check
      _
    $region39: #{tpu_custom_call.1} parent=1 // pred_check_branch
      %102 = sbr.rel (0) target = $region41
    $region40: #{tpu_custom_call.1} parent=1 // pred_region
      %103 = dma.done [#allocation7], 512
    $region41: #{tpu_custom_call.1} parent=1 // pred_fallthru
      _
    // Predicated region
    $region42: #{tpu_custom_call.1} parent=1 // pred_check
      _
    $region43: #{tpu_custom_call.1} parent=1 // pred_check_branch
      %105 = sbr.rel (0) target = $region45
    $region44: #{tpu_custom_call.1} parent=1 // pred_region
      %106 = dma.done [#allocation10], 16
    $region45: #{tpu_custom_call.1} parent=1 // pred_fallthru
      _
    // Predicated region
    $region46: #{tpu_custom_call.1} parent=1 // pred_check
      _
    $region47: #{tpu_custom_call.1} parent=1 // pred_check_branch
      %108 = sbr.rel (0) target = $region49
    $region48: #{tpu_custom_call.1} parent=1 // pred_region
      %109 = dma.done [#allocation10], 16
    $region49: #{tpu_custom_call.1} parent=1 // pred_fallthru
      _
    // Predicated region
    $region50: #{tpu_custom_call.1} parent=1 // pred_check
      _
    $region51: #{tpu_custom_call.1} parent=1 // pred_check_branch
      %111 = sbr.rel (0) target = $region53
    $region52: #{tpu_custom_call.1} parent=1 // pred_region
      %112 = dma.done [#allocation13], 2048
    $region53: #{tpu_custom_call.1} parent=1 // pred_fallthru
      _
    // Predicated region
    $region54: #{tpu_custom_call.1} parent=1 // pred_check
      _
    $region55: #{tpu_custom_call.1} parent=1 // pred_check_branch
      %114 = sbr.rel (0) target = $region57
    $region56: #{tpu_custom_call.1} parent=1 // pred_region
      %115 = dma.done [#allocation13], 16
    $region57: #{tpu_custom_call.1} parent=1 // pred_fallthru
      _
    %p116 = scmp.eq.s32.totalorder 0, 0
    // Predicated region
    $region58: #{tpu_custom_call.1} parent=1 // pred_check
      %p117 = pneg %p116
    $region59: #{tpu_custom_call.1} parent=1 // pred_check_branch
      %119 = sbr.rel (%p117) target = $region61
    $region60: #{tpu_custom_call.1} parent=1 // pred_region
      %vm120 = vcmask 261120
      %121 = vst.msk [vmem:[#allocation2] sm:$0xff] %vm120, 0.0
      %122 = vst.msk [vmem:[#allocation2 + $0x8] sm:$0xff] %vm120, 0.0
    $region61: #{tpu_custom_call.1} parent=1 // pred_fallthru
      _
    %v123 = vld [vmem:[#allocation3] sm:$0xff]
    %v124 = vld [vmem:[#allocation3 + $0x8] sm:$0xff]
    %v125 = vld [vmem:[#allocation6] sm:$0xff]
    %v126 = vld [vmem:[#allocation6 + $0x8] sm:$0xff]
    %v127 = vld [vmem:[#allocation6 + $0x10] sm:$0xff]
    %v128 = vld [vmem:[#allocation6 + $0x18] sm:$0xff]
    %v129 = vld [vmem:[#allocation9] sm:$0x1]
    %v131 = vlaneseq
    %v132 = vshrl.u32 %v131, 7
    %v133 = vsub.s32 0, %v132
    %v134 = vrot.slane %v129, %v133
    %vm136 = vcmask 261120
    %v138 = vsel %vm136, %v123, 0
    %v141 = vsel %vm136, %v124, 0
    %143 = vmatprep.subr.mxu0 0.0
    %144 = vmatpush1.msra.mxu0 %v125
    %145 = vmatprep.subr.mxu0 0.0
    %146 = vmatpush1.msra.mxu0 %v126
    %147 = vmatprep.subr.mxu0 0.0
    %148 = vmatpush1.msra.mxu0 %v127
    %149 = vmatprep.subr.mxu0 0.0
    %150 = vmatpush1.msra.mxu0 %v128
    %151 = vmatprep.subr.mxu0 0.0
    %152 = vmatpush1.msra.mxu0 0.0
    %153 = vmatprep.subr.mxu0 0.0
    %154 = vmatpush1.msra.mxu0 0.0
    %155 = vmatprep.subr.mxu0 0.0
    %156 = vmatpush1.msra.mxu0 0.0
    %157 = vmatprep.subr.mxu0 0.0
    %158 = vmatpush1.msra.mxu0 0.0
    %159 = vmatprep.subr.mxu0 0.0
    %160 = vmatpush1.msra.mxu0 0.0
    %161 = vmatprep.subr.mxu0 0.0
    %162 = vmatpush1.msra.mxu0 0.0
    %163 = vmatprep.subr.mxu0 0.0
    %164 = vmatpush1.msra.mxu0 0.0
    %165 = vmatprep.subr.mxu0 0.0
    %166 = vmatpush1.msra.mxu0 0.0
    %167 = vmatprep.subr.mxu0 0.0
    %168 = vmatpush1.msra.mxu0 0.0
    %169 = vmatprep.subr.mxu0 0.0
    %170 = vmatpush1.msra.mxu0 0.0
    %171 = vmatprep.subr.mxu0 0.0
    %172 = vmatpush1.msra.mxu0 0.0
    %173 = vmatprep.subr.mxu0 0.0
    %174 = vmatpush1.msra.mxu0 0.0
    %175 = vmatprep.subr.mxu0 0.0
    %176 = vmatpush1.msra.mxu0 0.0
    %177 = vmatprep.subr.mxu0 0.0
    %178 = vmatpush1.msra.mxu0 0.0
    %179 = vmatprep.subr.mxu0 0.0
    %180 = vmatpush1.msra.mxu0 0.0
    %181 = vmatprep.subr.mxu0 0.0
    %182 = vmatpush1.msra.mxu0 0.0
    %183 = vmatprep.subr.mxu0 0.0
    %184 = vmatpush1.msra.mxu0 0.0
    %185 = vmatprep.subr.mxu0 0.0
    %186 = vmatpush1.msra.mxu0 0.0
    %187 = vmatprep.subr.mxu0 0.0
    %188 = vmatpush1.msra.mxu0 0.0
    %189 = vmatprep.subr.mxu0 0.0
    %190 = vmatpush1.msra.mxu0 0.0
    %191 = vmatprep.subr.mxu0 0.0
    %192 = vmatpush1.msra.mxu0 0.0
    %193 = vmatprep.subr.mxu0 0.0
    %194 = vmatpush1.msra.mxu0 0.0
    %195 = vmatprep.subr.mxu0 0.0
    %196 = vmatpush1.msra.mxu0 0.0
    %197 = vmatprep.subr.mxu0 0.0
    %198 = vmatpush1.msra.mxu0 0.0
    %199 = vmatprep.subr.mxu0 0.0
    %200 = vmatpush1.msra.mxu0 0.0
    %201 = vmatprep.subr.mxu0 0.0
    %202 = vmatpush1.msra.mxu0 0.0
    %203 = vmatprep.subr.mxu0 0.0
    %204 = vmatpush1.msra.mxu0 0.0
    %205 = vmatprep.subr.mxu0 0.0
    %206 = vmatpush1.msra.mxu0 0.0
    %207 = vmatprep.mubr.f32.mxu0 0.0
    %208 = vmatmul.mubr.f32.gmra.mrb[0].mxu0 %v138
    %v209 = vpop.f32.mrb[0].mxu0
    %v210 = vadd.f32 %v134, %v209
    %v211 = vpop.f32.mrb[0].mxu0
    %212 = vmatprep.mubr.f32.mxu0 0.0
    %213 = vmatmul.mubr.f32.gmra.mrb[0].mxu0 %v141
    %v214 = vpop.f32.mrb[0].mxu0
    %v215 = vadd.f32 %v134, %v214
    %v216 = vpop.f32.mrb[0].mxu0
    %217 = vdwg.mxu0
    %v218 = vld [vmem:[#allocation8] sm:$0xff]
    %v219 = vld [vmem:[#allocation8 + $0x8] sm:$0xff]
    %v220 = vld [vmem:[#allocation8 + $0x10] sm:$0xff]
    %v221 = vld [vmem:[#allocation8 + $0x18] sm:$0xff]
    %v222 = vld [vmem:[#allocation11] sm:$0x1]
    %v224 = vlaneseq
    %v225 = vshrl.u32 %v224, 7
    %v226 = vsub.s32 0, %v225
    %v227 = vrot.slane %v222, %v226
    %229 = vmatprep.subr.mxu0 0.0
    %230 = vmatpush1.msra.mxu0 %v218
    %231 = vmatprep.subr.mxu0 0.0
    %232 = vmatpush1.msra.mxu0 %v219
    %233 = vmatprep.subr.mxu0 0.0
    %234 = vmatpush1.msra.mxu0 %v220
    %235 = vmatprep.subr.mxu0 0.0
    %236 = vmatpush1.msra.mxu0 %v221
    %237 = vmatprep.subr.mxu0 0.0
    %238 = vmatpush1.msra.mxu0 0.0
    %239 = vmatprep.subr.mxu0 0.0
    %240 = vmatpush1.msra.mxu0 0.0
    %241 = vmatprep.subr.mxu0 0.0
    %242 = vmatpush1.msra.mxu0 0.0
    %243 = vmatprep.subr.mxu0 0.0
    %244 = vmatpush1.msra.mxu0 0.0
    %245 = vmatprep.subr.mxu0 0.0
    %246 = vmatpush1.msra.mxu0 0.0
    %247 = vmatprep.subr.mxu0 0.0
    %248 = vmatpush1.msra.mxu0 0.0
    %249 = vmatprep.subr.mxu0 0.0
    %250 = vmatpush1.msra.mxu0 0.0
    %251 = vmatprep.subr.mxu0 0.0
    %252 = vmatpush1.msra.mxu0 0.0
    %253 = vmatprep.subr.mxu0 0.0
    %254 = vmatpush1.msra.mxu0 0.0
    %255 = vmatprep.subr.mxu0 0.0
    %256 = vmatpush1.msra.mxu0 0.0
    %257 = vmatprep.subr.mxu0 0.0
    %258 = vmatpush1.msra.mxu0 0.0
    %259 = vmatprep.subr.mxu0 0.0
    %260 = vmatpush1.msra.mxu0 0.0
    %261 = vmatprep.subr.mxu0 0.0
    %262 = vmatpush1.msra.mxu0 0.0
    %263 = vmatprep.subr.mxu0 0.0
    %264 = vmatpush1.msra.mxu0 0.0
    %265 = vmatprep.subr.mxu0 0.0
    %266 = vmatpush1.msra.mxu0 0.0
    %267 = vmatprep.subr.mxu0 0.0
    %268 = vmatpush1.msra.mxu0 0.0
    %269 = vmatprep.subr.mxu0 0.0
    %270 = vmatpush1.msra.mxu0 0.0
    %271 = vmatprep.subr.mxu0 0.0
    %272 = vmatpush1.msra.mxu0 0.0
    %273 = vmatprep.subr.mxu0 0.0
    %274 = vmatpush1.msra.mxu0 0.0
    %275 = vmatprep.subr.mxu0 0.0
    %276 = vmatpush1.msra.mxu0 0.0
    %277 = vmatprep.subr.mxu0 0.0
    %278 = vmatpush1.msra.mxu0 0.0
    %279 = vmatprep.subr.mxu0 0.0
    %280 = vmatpush1.msra.mxu0 0.0
    %281 = vmatprep.subr.mxu0 0.0
    %282 = vmatpush1.msra.mxu0 0.0
    %283 = vmatprep.subr.mxu0 0.0
    %284 = vmatpush1.msra.mxu0 0.0
    %285 = vmatprep.subr.mxu0 0.0
    %286 = vmatpush1.msra.mxu0 0.0
    %287 = vmatprep.subr.mxu0 0.0
    %288 = vmatpush1.msra.mxu0 0.0
    %289 = vmatprep.subr.mxu0 0.0
    %290 = vmatpush1.msra.mxu0 0.0
    %291 = vmatprep.subr.mxu0 0.0
    %292 = vmatpush1.msra.mxu0 0.0
    %293 = vmatprep.mubr.f32.mxu0 0.0
    %294 = vmatmul.mubr.f32.gmra.mrb[0].mxu0 %v138
    %v295 = vpop.f32.mrb[0].mxu0
    %v296 = vadd.f32 %v227, %v295
    %v297 = vpop.f32.mrb[0].mxu0
    %298 = vmatprep.mubr.f32.mxu0 0.0
    %299 = vmatmul.mubr.f32.gmra.mrb[0].mxu0 %v141
    %v300 = vpop.f32.mrb[0].mxu0
    %v301 = vadd.f32 %v227, %v300
    %v302 = vpop.f32.mrb[0].mxu0
    %303 = vdwg.mxu0
    %v304 = vmul.f32 %v296, 0.5
    %v305 = vmul.f32 %v301, 0.5
    %v306 = vmul.f32 %v296, 0.70710677
    %v307 = vmul.f32 %v301, 0.70710677
    %v308 = verf.f32.pop %v306
    %v309 = verf.f32.pop %v307
    %v310 = vadd.f32 %v308, 1.0
    %v311 = vadd.f32 %v309, 1.0
    %v312 = vmul.f32 %v304, %v310
    %v313 = vmul.f32 %v305, %v311
    %v314 = vmul.f32 %v210, %v312
    %v315 = vmul.f32 %v215, %v313
    %v316 = vld [vmem:[#allocation2] sm:$0xff]
    %v317 = vld [vmem:[#allocation2 + $0x8] sm:$0xff]
    %v318 = vld [vmem:[#allocation12] sm:$0xff]
    %v319 = vld [vmem:[#allocation12 + $0x8] sm:$0xff]
    %v320 = vld [vmem:[#allocation12 + $0x10] sm:$0xff]
    %v321 = vld [vmem:[#allocation12 + $0x18] sm:$0xff]
    %v322 = vld [vmem:[#allocation12 + $0x20] sm:$0xff]
    %v323 = vld [vmem:[#allocation12 + $0x28] sm:$0xff]
    %v324 = vld [vmem:[#allocation12 + $0x30] sm:$0xff]
    %v325 = vld [vmem:[#allocation12 + $0x38] sm:$0xff]
    %v326 = vld [vmem:[#allocation12 + $0x40] sm:$0xff]
    %v327 = vld [vmem:[#allocation12 + $0x48] sm:$0xff]
    %v328 = vld [vmem:[#allocation12 + $0x50] sm:$0xff]
    %v329 = vld [vmem:[#allocation12 + $0x58] sm:$0xff]
    %v330 = vld [vmem:[#allocation12 + $0x60] sm:$0xff]
    %v331 = vld [vmem:[#allocation12 + $0x68] sm:$0xff]
    %v332 = vld [vmem:[#allocation12 + $0x70] sm:$0xff]
    %v333 = vld [vmem:[#allocation12 + $0x78] sm:$0xff]
    %334 = vmatprep.subr.mxu0 0.0
    %335 = vmatpush1.msra.mxu0 %v318
    %336 = vmatprep.subr.mxu0 0.0
    %337 = vmatpush1.msra.mxu0 %v319
    %338 = vmatprep.subr.mxu0 0.0
    %339 = vmatpush1.msra.mxu0 %v320
    %340 = vmatprep.subr.mxu0 0.0
    %341 = vmatpush1.msra.mxu0 %v321
    %342 = vmatprep.subr.mxu0 0.0
    %343 = vmatpush1.msra.mxu0 %v322
    %344 = vmatprep.subr.mxu0 0.0
    %345 = vmatpush1.msra.mxu0 %v323
    %346 = vmatprep.subr.mxu0 0.0
    %347 = vmatpush1.msra.mxu0 %v324
    %348 = vmatprep.subr.mxu0 0.0
    %349 = vmatpush1.msra.mxu0 %v325
    %350 = vmatprep.subr.mxu0 0.0
    %351 = vmatpush1.msra.mxu0 %v326
    %352 = vmatprep.subr.mxu0 0.0
    %353 = vmatpush1.msra.mxu0 %v327
    %354 = vmatprep.subr.mxu0 0.0
    %355 = vmatpush1.msra.mxu0 %v328
    %356 = vmatprep.subr.mxu0 0.0
    %357 = vmatpush1.msra.mxu0 %v329
    %358 = vmatprep.subr.mxu0 0.0
    %359 = vmatpush1.msra.mxu0 %v330
    %360 = vmatprep.subr.mxu0 0.0
    %361 = vmatpush1.msra.mxu0 %v331
    %362 = vmatprep.subr.mxu0 0.0
    %363 = vmatpush1.msra.mxu0 %v332
    %364 = vmatprep.subr.mxu0 0.0
    %365 = vmatpush1.msra.mxu0 %v333
    %366 = vmatprep.subr.mxu0 0.0
    %367 = vmatpush1.msra.mxu0 0.0
    %368 = vmatprep.subr.mxu0 0.0
    %369 = vmatpush1.msra.mxu0 0.0
    %370 = vmatprep.subr.mxu0 0.0
    %371 = vmatpush1.msra.mxu0 0.0
    %372 = vmatprep.subr.mxu0 0.0
    %373 = vmatpush1.msra.mxu0 0.0
    %374 = vmatprep.subr.mxu0 0.0
    %375 = vmatpush1.msra.mxu0 0.0
    %376 = vmatprep.subr.mxu0 0.0
    %377 = vmatpush1.msra.mxu0 0.0
    %378 = vmatprep.subr.mxu0 0.0
    %379 = vmatpush1.msra.mxu0 0.0
    %380 = vmatprep.subr.mxu0 0.0
    %381 = vmatpush1.msra.mxu0 0.0
    %382 = vmatprep.subr.mxu0 0.0
    %383 = vmatpush1.msra.mxu0 0.0
    %384 = vmatprep.subr.mxu0 0.0
    %385 = vmatpush1.msra.mxu0 0.0
    %386 = vmatprep.subr.mxu0 0.0
    %387 = vmatpush1.msra.mxu0 0.0
    %388 = vmatprep.subr.mxu0 0.0
    %389 = vmatpush1.msra.mxu0 0.0
    %390 = vmatprep.subr.mxu0 0.0
    %391 = vmatpush1.msra.mxu0 0.0
    %392 = vmatprep.subr.mxu0 0.0
    %393 = vmatpush1.msra.mxu0 0.0
    %394 = vmatprep.subr.mxu0 0.0
    %395 = vmatpush1.msra.mxu0 0.0
    %396 = vmatprep.subr.mxu0 0.0
    %397 = vmatpush1.msra.mxu0 0.0
    %398 = vmatprep.mubr.f32.mxu0 0.0
    %399 = vmatmul.mubr.f32.gmra.mrb[0].mxu0 %v314
    %v400 = vpop.f32.mrb[0].mxu0
    %v401 = vadd.f32 0.0, %v400
    %v402 = vpop.f32.mrb[0].mxu0
    %403 = vmatprep.mubr.f32.mxu0 0.0
    %404 = vmatmul.mubr.f32.gmra.mrb[0].mxu0 %v315
    %v405 = vpop.f32.mrb[0].mxu0
    %v406 = vadd.f32 0.0, %v405
    %v407 = vpop.f32.mrb[0].mxu0
    %408 = vdwg.mxu0
    %v409 = vadd.f32 %v316, %v401
    %v410 = vadd.f32 %v317, %v406
    %411 = vst.msk [vmem:[#allocation2] sm:$0xff] %vm136, %v409
    %412 = vst.msk [vmem:[#allocation2 + $0x8] sm:$0xff] %vm136, %v410
    // Predicated region
    $region62: #{tpu_custom_call.1} parent=1 // pred_check
      %p413 = pneg %p116
    $region63: #{tpu_custom_call.1} parent=1 // pred_check_branch
      %415 = sbr.rel (%p413) target = $region65
    $region64: #{tpu_custom_call.1} parent=1 // pred_region
      %v416 = vld [vmem:[#allocation2] sm:$0xff]
      %v417 = vld [vmem:[#allocation2 + $0x8] sm:$0xff]
      %v418 = vld [vmem:[#allocation14] sm:$0x1]
      %v420 = vlaneseq
      %v421 = vshrl.u32 %v420, 7
      %v422 = vsub.s32 0, %v421
      %v423 = vrot.slane %v418, %v422
      %v425 = vadd.f32 %v416, %v423
      %v426 = vadd.f32 %v417, %v423
      %427 = vst.msk [vmem:[#allocation15] sm:$0xff] %vm136, %v425
      %428 = vst.msk [vmem:[#allocation15 + $0x8] sm:$0xff] %vm136, %v426
    $region65: #{tpu_custom_call.1} parent=1 // pred_fallthru
      _
    // Predicated region
    $region66: #{tpu_custom_call.1} parent=1 // pred_check
      _
    $region67: #{tpu_custom_call.1} parent=1 // pred_check_branch
      %430 = sbr.rel (0) target = $region69
    $region68: #{tpu_custom_call.1} parent=1 // pred_region
      %s432 = ssub.s32 256, 256
      %433 = vsyncadd [#allocation5], %s432
      %s434 = sshll.u32 [#allocation15], 4
      %s435 = int_to_ptr.vmem [resolvable:$true] %s434
      %440 = dma.vmem_to_hbm [thread:$0]  %s435, 256, %s7, [#allocation5], 128, 128, 8
    $region69: #{tpu_custom_call.1} parent=1 // pred_fallthru
      _
    // Predicated region
    $region70: #{tpu_custom_call.1} parent=1 // pred_check
      _
    $region71: #{tpu_custom_call.1} parent=1 // pred_check_branch
      %442 = sbr.rel (0) target = $region73
    $region72: #{tpu_custom_call.1} parent=1 // pred_region
      %443 = dma.done [#allocation5], 256
    $region73: #{tpu_custom_call.1} parent=1 // pred_fallthru
      _
    %444 = vsyncpa [#allocation4], 1
    %445 = vsyncpa [#allocation7], 1
    %446 = vsyncpa [#allocation10], 1
    %447 = vsyncpa [#allocation13], 1
    %448 = vsyncpa [#allocation5], 1

</llo_original>
